<compile_context>
chip_gen: v7x
topology: tpu7x:2x2x1
jax: 0.10.0
libtpu: 0.0.40
codegen_flags: <defaults>
</compile_context>

<pallas_src>
import functools

import jax
import jax.numpy as jnp
from jax import lax
from jax.experimental import pallas as pl
from jax.experimental.pallas import tpu as pltpu


def _round_up(x, m):
    return (x + m - 1) // m * m


def _vmem_limit_bytes():
    """Scoped-VMEM limit: physical capacity minus headroom, capped for v5e/v6e."""
    try:
        info = pltpu.get_tpu_info()
        cap = int(getattr(info, "vmem_capacity_bytes", 64 * 1024 * 1024))
    except Exception:  # conservative fallback (v7x physical = 64 MiB)
        cap = 64 * 1024 * 1024
    return int(min(cap - 8 * 1024 * 1024, 112 * 1024 * 1024))


def _select_tiles(M, N, K, lhs_bytes, rhs_bytes, out_bytes, budget):
    """Largest (tm, tn) dividing (M, N) whose double-buffered working set fits `budget`."""
    best = None
    for tm in (1024, 512, 256, 128, 64, 32, 16, 8):
        if M % tm:
            continue
        for tn in (2048, 1024, 512, 256, 128):
            if N % tn:
                continue
            vmem = (2 * tm * K * lhs_bytes        # x tiles (double buffered)
                    + 2 * K * tn * rhs_bytes      # w tiles
                    + 2 * tn * 4                  # bias (f32)
                    + 2 * tm * tn * out_bytes)    # out tiles
            if vmem > budget:
                continue
            key = (tm * tn, min(tm, tn))          # biggest, then most square
            if best is None or key > best[0]:
                best = (key, tm, tn)
    assert best is not None, ("no GEMM tile fits the VMEM budget", M, N, K, budget)
    return best[1], best[2]


# ---------------------------------------------------------------------------
# Generic [M,K] @ [K,N] + bias kernel — fully parallel grid.
# ---------------------------------------------------------------------------
def _matmul_bias_kernel(x_ref, w_ref, b_ref, o_ref):
    w = w_ref[...]
    acc = jnp.dot(x_ref[...].astype(w.dtype), w,
                  preferred_element_type=jnp.float32)
    o_ref[...] = (acc + b_ref[...]).astype(o_ref.dtype)


def matmul_bias(x, w, b, *, out_dtype=jnp.float32, weight_stationary=False):
    """x:[M,K] @ w:[K,N] + b:[1,N] -> [M,N].  Callers pad so M%8==0, N%128==0.

    weight_stationary=True makes the weight block index vary only on the OUTER grid
    axis (weight read from HBM once; activations restream N/tn times).  Use it when
    |W| >> |x| (the vocab projection); default streams W per row-tile instead.
    """
    M, K = x.shape
    K2, N = w.shape
    assert K == K2 and M % 8 == 0 and N % 128 == 0, (M, K, N)
    limit = _vmem_limit_bytes()
    tm, tn = _select_tiles(M, N, K,
                           x.dtype.itemsize, w.dtype.itemsize,
                           jnp.dtype(out_dtype).itemsize,
                           budget=min(limit, 40 * 1024 * 1024))
    if weight_stationary:
        grid = (N // tn, M // tm)                 # inner (fast) axis = rows of x
        in_specs = [
            pl.BlockSpec((tm, K), lambda j, i: (i, 0)),
            pl.BlockSpec((K, tn), lambda j, i: (0, j)),   # constant over inner axis
            pl.BlockSpec((1, tn), lambda j, i: (0, j)),
        ]
        out_specs = pl.BlockSpec((tm, tn), lambda j, i: (i, j))
    else:
        grid = (M // tm, N // tn)                 # inner (fast) axis = cols of w
        in_specs = [
            pl.BlockSpec((tm, K), lambda i, j: (i, 0)),   # constant over inner axis
            pl.BlockSpec((K, tn), lambda i, j: (0, j)),
            pl.BlockSpec((1, tn), lambda i, j: (0, j)),
        ]
        out_specs = pl.BlockSpec((tm, tn), lambda i, j: (i, j))

    return pl.pallas_call(
        _matmul_bias_kernel,
        out_shape=jax.ShapeDtypeStruct((M, N), out_dtype),
        grid_spec=pltpu.PrefetchScalarGridSpec(
            num_scalar_prefetch=0,
            grid=grid,
            in_specs=in_specs,
            out_specs=out_specs,
        ),
        compiler_params=pltpu.CompilerParams(
            # Both axes independent -> megacore-shardable on v7x.
            dimension_semantics=("parallel", "parallel"),
            vmem_limit_bytes=limit,
        ),
    )(x, w, b)


# ---------------------------------------------------------------------------
# Sequential LSTM recurrence: only h_prev @ W_hh remains on the critical path.
# ---------------------------------------------------------------------------
def _lstm_recurrent_kernel(gx_ref, whh_ref, h_out_ref, h_sc, c_sc, *, tc, hp):
    @pl.when(pl.program_id(0) == 0)
    def _():
        h_sc[...] = jnp.zeros_like(h_sc)
        c_sc[...] = jnp.zeros_like(c_sc)

    whh = whh_ref[...]

    def step(t, carry):
        # gates_x already holds x_t @ W_ih + (b_ih + b_hh); only the recurrent
        # matmul runs per timestep.  Gate math and h/c state stay f32.
        gates = gx_ref[t].astype(jnp.float32) + jnp.dot(
            h_sc[...].astype(whh.dtype), whh, preferred_element_type=jnp.float32)
        # Lane-aligned gate slices (hp is a multiple of 128); PyTorch order i,f,g,o.
        i_g = jax.nn.sigmoid(gates[:, 0 * hp:1 * hp])
        f_g = jax.nn.sigmoid(gates[:, 1 * hp:2 * hp])
        g_g = jnp.tanh(gates[:, 2 * hp:3 * hp])
        o_g = jax.nn.sigmoid(gates[:, 3 * hp:4 * hp])
        c_new = f_g * c_sc[...] + i_g * g_g
        h_new = o_g * jnp.tanh(c_new)
        c_sc[...] = c_new
        h_sc[...] = h_new
        h_out_ref[t] = h_new.astype(h_out_ref.dtype)
        return carry

    lax.fori_loop(0, tc, step, 0, unroll=True)


def lstm_recurrence(gates_x, w_hh_p, *, time_chunk, out_dtype=jnp.bfloat16):
    Tp, Bp, G = gates_x.shape          # G = 4 * Hp
    Hp = G // 4
    return pl.pallas_call(
        functools.partial(_lstm_recurrent_kernel, tc=time_chunk, hp=Hp),
        out_shape=jax.ShapeDtypeStruct((Tp, Bp, Hp), out_dtype),
        grid_spec=pltpu.PrefetchScalarGridSpec(
            num_scalar_prefetch=0,
            grid=(Tp // time_chunk,),
            in_specs=[
                pl.BlockSpec((time_chunk, Bp, G), lambda s: (s, 0, 0)),   # gates_x chunk
                # W_hh block index never changes -> single-buffer it (saves a full
                # W_hh copy of VMEM vs the default double buffering).
                pl.BlockSpec((Hp, G), lambda s: (0, 0),
                             pipeline_mode=pl.Buffered(1)),
            ],
            out_specs=pl.BlockSpec((time_chunk, Bp, Hp), lambda s: (s, 0, 0)),
            scratch_shapes=[
                pltpu.VMEM((Bp, Hp), jnp.float32),   # h state (f32)
                pltpu.VMEM((Bp, Hp), jnp.float32),   # c state (f32)
            ],
        ),
        compiler_params=pltpu.CompilerParams(
            # True recurrence over time: this axis must stay sequential.
            # TODO(synk): on v7x the second TensorCore idles here; gate-column sharding
            # via pl.core_map would recover it.
            dimension_semantics=("arbitrary",),
            vmem_limit_bytes=_vmem_limit_bytes(),
        ),
    )(gates_x, w_hh_p)


# ---------------------------------------------------------------------------
# Full forward pass.
# ---------------------------------------------------------------------------
def lstm_model_forward(x_ids, params, *, matmul_dtype=jnp.bfloat16, time_chunk=16):
    """x_ids: int32 [B, T].  Returns logits [B, T, V] (batch_first), float32.

    matmul_dtype is used for all GEMM operands and for the streamed gates_x / h
    tensors; accumulation and gate/state math stay float32.  Pass jnp.float32 for a
    full-precision reference path.
    """
    emb = params["embedding"]            # [V, E]
    w_ih = params["w_ih"]                # [E, 4H]   (gate order i, f, g, o)
    w_hh = params["w_hh"]                # [H, 4H]
    bias = params["bias"]                # [1, 4H]   (= b_ih + b_hh)
    w_fc = params["w_fc"]                # [H, V]
    b_fc = params["b_fc"]                # [1, V]

    B, T = x_ids.shape
    V, E = emb.shape
    H = w_hh.shape[0]

    Hp = _round_up(H, 128)                          # lane-aligned gate blocks
    Vp = _round_up(V, 256)                          # lane-dense, 256-MXU-friendly logits
    Bp = _round_up(B, 8)                            # sublane-full batch tiles
    Tc = max(8, min(time_chunk, _round_up(T, 8)))   # timesteps per recurrence grid step
    Tp = _round_up(T, Tc)

    # ---- pad weights once (zero padding keeps padded channels inert) --------
    def pad_gate_cols(w):                # [lead, 4H] -> [lead, 4Hp], per-gate padding
        lead = w.shape[0]
        w4 = w.reshape(lead, 4, H)
        return jnp.pad(w4, ((0, 0), (0, 0), (0, Hp - H))).reshape(lead, 4 * Hp)

    w_ih_p = pad_gate_cols(w_ih).astype(matmul_dtype)                        # [E, 4Hp]
    w_hh_p = jnp.pad(pad_gate_cols(w_hh), ((0, Hp - H), (0, 0))).astype(matmul_dtype)
    bias_p = pad_gate_cols(bias)                                             # f32 [1, 4Hp]
    w_fc_p = jnp.pad(w_fc, ((0, Hp - H), (0, Vp - V))).astype(matmul_dtype)  # [Hp, Vp]
    b_fc_p = jnp.pad(b_fc, ((0, 0), (0, Vp - V)))                            # f32 [1, Vp]

    # ---- embedding lookup, gathered directly time-major (tiny id transpose) --
    ids_p = jnp.pad(x_ids, ((0, Bp - B), (0, Tp - T)))                       # [Bp, Tp]
    x_emb = jnp.take(emb, ids_p.T, axis=0).astype(matmul_dtype)              # [Tp, Bp, E]

    # ---- (1) input projection for ALL timesteps: one parallel GEMM ----------
    gates_x = matmul_bias(x_emb.reshape(Tp * Bp, E), w_ih_p, bias_p,
                          out_dtype=matmul_dtype)                            # [Tp*Bp, 4Hp]
    gates_x = gates_x.reshape(Tp, Bp, 4 * Hp)

    # ---- (2) sequential recurrence (only h @ W_hh inside the loop) ----------
    h_all = lstm_recurrence(gates_x, w_hh_p, time_chunk=Tc,
                            out_dtype=matmul_dtype)                          # [Tp, Bp, Hp]

    # ---- (3) vocab projection: weight-stationary GEMM, batch-major so the big
    #          [*, V] logits tensor is never transposed (only the much smaller,
    #          bf16 hidden tensor is).
    h_bt = jnp.transpose(h_all, (1, 0, 2))                                   # [Bp, Tp, Hp]
    logits = matmul_bias(h_bt.reshape(Bp * Tp, Hp), w_fc_p, b_fc_p,
                         out_dtype=jnp.float32, weight_stationary=True)      # [Bp*Tp, Vp]
    logits = logits.reshape(Bp, Tp, Vp)

    return logits[:B, :T, :V]                                                # [B, T, V]


def init_params(key, vocab_size, embedding_dim, hidden_dim):
    k = jax.random.split(key, 7)
    s = 1.0 / jnp.sqrt(hidden_dim)
    return {
        "embedding": jax.random.normal(k[0], (vocab_size, embedding_dim), jnp.float32),
        # PyTorch stores weight_ih as [4H, E] / weight_hh as [4H, H]; kept
        # pre-transposed here for right-multiplication.
        "w_ih": jax.random.uniform(k[1], (embedding_dim, 4 * hidden_dim),
                                   jnp.float32, -s, s),
        "w_hh": jax.random.uniform(k[2], (hidden_dim, 4 * hidden_dim),
                                   jnp.float32, -s, s),
        # bias = b_ih + b_hh, fused
        "bias": (jax.random.uniform(k[3], (1, 4 * hidden_dim), jnp.float32, -s, s)
                 + jax.random.uniform(k[4], (1, 4 * hidden_dim), jnp.float32, -s, s)),
        "w_fc": jax.random.uniform(k[5], (hidden_dim, vocab_size),
                                   jnp.float32, -s, s),
        "b_fc": jax.random.uniform(k[6], (1, vocab_size), jnp.float32, -s, s),
    }


if __name__ == "__main__":
    vocab_size = 32
    embedding_dim = 16
    hidden_dim = 32
    batch = 2
    seq = 8

    key = jax.random.PRNGKey(0)
    pkey, xkey = jax.random.split(key)
    params = init_params(pkey, vocab_size, embedding_dim, hidden_dim)
    x_ids = jax.random.randint(xkey, (batch, seq), 0, vocab_size, dtype=jnp.int32)

    logits = lstm_model_forward(x_ids, params)     # bf16 matmuls, f32 accumulation
    jax.block_until_ready(logits)

    assert logits.shape == (batch, seq, vocab_size)
    assert logits.dtype == jnp.float32
    print("KERNEL_OK")
</pallas_src>

<mosaic_0001>
module attributes {stable_mosaic.version = 11 : i64} {
  func.func @_matmul_bias_kernel(%arg0: i32, %arg1: i32, %arg2: memref<64x16xbf16, #tpu.memory_space<vmem>>, %arg3: memref<16x512xbf16, #tpu.memory_space<vmem>>, %arg4: memref<1x512xf32, #tpu.memory_space<vmem>>, %arg5: memref<64x512xbf16, #tpu.memory_space<vmem>>) attributes {dimension_semantics = [#tpu.dimension_semantics<parallel>, #tpu.dimension_semantics<parallel>], iteration_bounds = array<i64: 1, 1>, scalar_prefetch = 0 : i64, scratch_operands = 0 : i64, tpu.core_type = #tpu.core_type<tc>, window_params = [{transform_indices = @transform_0, window_bounds = array<i64: 64, 16>}, {transform_indices = @transform_1, window_bounds = array<i64: 16, 512>}, {transform_indices = @transform_2, window_bounds = array<i64: 1, 512>}, {transform_indices = @transform_3, window_bounds = array<i64: 64, 512>}]} {
    %c0 = arith.constant 0 : index
    %c0_0 = arith.constant 0 : index
    %0 = vector.load %arg3[%c0, %c0_0] : memref<16x512xbf16, #tpu.memory_space<vmem>>, vector<16x512xbf16>
    %c0_1 = arith.constant 0 : index
    %c0_2 = arith.constant 0 : index
    %1 = vector.load %arg2[%c0_1, %c0_2] : memref<64x16xbf16, #tpu.memory_space<vmem>>, vector<64x16xbf16>
    %cst = arith.constant dense<0.000000e+00> : vector<64x512xf32>
    %2 = tpu.matmul %1, %0, %cst {dimension_numbers = #tpu.dot_dimension_numbers<[1], [0], [0], [1], [0, 0, 1, 1], [], []>} : vector<64x16xbf16>, vector<16x512xbf16>, vector<64x512xf32> -> vector<64x512xf32>
    %c0_3 = arith.constant 0 : index
    %c0_4 = arith.constant 0 : index
    %3 = vector.load %arg4[%c0_3, %c0_4] : memref<1x512xf32, #tpu.memory_space<vmem>>, vector<1x512xf32>
    %4 = vector.broadcast %3 : vector<1x512xf32> to vector<64x512xf32>
    %5 = arith.addf %2, %4 : vector<64x512xf32>
    %6 = arith.truncf %5 : vector<64x512xf32> to vector<64x512xbf16>
    %c0_5 = arith.constant 0 : index
    %c0_6 = arith.constant 0 : index
    %7 = vector.load %arg5[%c0_5, %c0_6] : memref<64x512xbf16, #tpu.memory_space<vmem>>, vector<64x512xbf16>
    tpu.vector_store %arg5[%c0_5, %c0_6], %6 {strides = array<i32>} : memref<64x512xbf16, #tpu.memory_space<vmem>>, vector<64x512xbf16>,
    return
  }
  func.func @transform_0(%arg0: i32, %arg1: i32) -> (i32, i32) {
    %c0_i32 = arith.constant 0 : i32
    %c0_i32_0 = arith.constant 0 : i32
    return %arg0, %c0_i32 : i32, i32
  }
  func.func @transform_1(%arg0: i32, %arg1: i32) -> (i32, i32) {
    %c0_i32 = arith.constant 0 : i32
    %c0_i32_0 = arith.constant 0 : i32
    return %c0_i32, %arg1 : i32, i32
  }
  func.func @transform_2(%arg0: i32, %arg1: i32) -> (i32, i32) {
    %c0_i32 = arith.constant 0 : i32
    %c0_i32_0 = arith.constant 0 : i32
    return %c0_i32, %arg1 : i32, i32
  }
  func.func @transform_3(%arg0: i32, %arg1: i32) -> (i32, i32) {
    %c0_i32 = arith.constant 0 : i32
    return %arg0, %arg1 : i32, i32
  }
}

</mosaic_0001>

<llo_original>
// kernel: tpu_custom_call.1
$region0: #{tpu_custom_call.1}
  #allocation0 [shape = 'u32[]', space=smem, size = 0x4, offset = 0x4, fixed_abs, tag = 'smem constant byte address 0x4 - core index']
  #allocation1 [shape = 'u32[144,128]{1,0:T(1,128)}', space=vmem, size = 0x12000, scoped, tag = 'internal scratch']
  %s0 = inlined_call_operand.vmem [shape: bf16[64,16], index: 0, kind: input, shape index: {}]
  %s1 = inlined_call_operand.vmem [shape: bf16[16,512], index: 1, kind: input, shape index: {}]
  %s2 = inlined_call_operand.vmem [shape: f32[1,512], index: 2, kind: input, shape index: {}]
  %s3 = inlined_call_operand.hbm [shape: bf16[64,512], index: 3, kind: output, shape index: {}]
  %s4 = sld [smem:[#allocation0]]
  $region22: #{tpu_custom_call.1} parent=0
    _
  %s6 = ssub.s32 1, %s4
  %s7 = scalar_select 0, %s6, %s4
  $region1: #{tpu_custom_call.1} parent=0
    #allocation2 [shape = 'u8[65536]{0}', space=vmem, size = 0x10000, scoped, tag = 'output window, operand 0, single buffered']
    #allocation3 [shape = 's32[1]{0}', space=sflag, size = 0x4, scoped, tag = 'scoped memory for tpu_custom_call.1']
    %8 = vsyncpa [#allocation3], 0
    // Predicated region
    $region2: #{tpu_custom_call.1} parent=1 // pred_check
      _
    $region3: #{tpu_custom_call.1} parent=1 // pred_check_branch
      %10 = sbr.rel (0) target = $region5
    $region4: #{tpu_custom_call.1} parent=1 // pred_region
      _
    $region5: #{tpu_custom_call.1} parent=1 // pred_fallthru
      _
    // Predicated region
    $region6: #{tpu_custom_call.1} parent=1 // pred_check
      _
    $region7: #{tpu_custom_call.1} parent=1 // pred_check_branch
      %12 = sbr.rel (0) target = $region9
    $region8: #{tpu_custom_call.1} parent=1 // pred_region
      _
    $region9: #{tpu_custom_call.1} parent=1 // pred_fallthru
      _
    // Predicated region
    $region10: #{tpu_custom_call.1} parent=1 // pred_check
      _
    $region11: #{tpu_custom_call.1} parent=1 // pred_check_branch
      %14 = sbr.rel (0) target = $region13
    $region12: #{tpu_custom_call.1} parent=1 // pred_region
      _
    $region13: #{tpu_custom_call.1} parent=1 // pred_fallthru
      _
    %v16 = vld [vmem:[%s1] sm:$0xff]
    %v17 = vld [vmem:[%s1 + $0x8] sm:$0xff]
    %v18 = vld [vmem:[%s1 + $0x10] sm:$0xff]
    %v19 = vld [vmem:[%s1 + $0x18] sm:$0xff]
    %v20 = vld [vmem:[%s0] sm:$0xf]
    %v21 = vld [vmem:[%s0 + $0x4] sm:$0xf]
    %v22 = vld [vmem:[%s0 + $0x8] sm:$0xf]
    %v23 = vld [vmem:[%s0 + $0xc] sm:$0xf]
    %v24 = vld [vmem:[%s0 + $0x10] sm:$0xf]
    %v25 = vld [vmem:[%s0 + $0x14] sm:$0xf]
    %v26 = vld [vmem:[%s0 + $0x18] sm:$0xf]
    %v27 = vld [vmem:[%s0 + $0x1c] sm:$0xf]
    %v28 = vld [vmem:[%s2] sm:$0xf]
    %v30 = vlaneseq
    %v31 = vshrl.u32 %v30, 7
    %v32 = vsub.s32 0, %v31
    %v33 = vrot.slane %v28, %v32
    %v34 = vlaneseq
    %v35 = vshrl.u32 %v34, 7
    %v36 = vsub.s32 1, %v35
    %v37 = vrot.slane %v28, %v36
    %v38 = vlaneseq
    %v39 = vshrl.u32 %v38, 7
    %v40 = vsub.s32 2, %v39
    %v41 = vrot.slane %v28, %v40
    %v42 = vlaneseq
    %v43 = vshrl.u32 %v42, 7
    %v44 = vsub.s32 3, %v43
    %v45 = vrot.slane %v28, %v44
    %v58 = vunpack.c.l.b16 %v20
    %v59 = vunpack.c.l.b16 %v21
    %v60 = vunpack.c.l.b16 %v22
    %v61 = vunpack.c.l.b16 %v23
    %v62 = vunpack.c.l.b16 %v24
    %v63 = vunpack.c.l.b16 %v25
    %v64 = vunpack.c.l.b16 %v26
    %v65 = vunpack.c.l.b16 %v27
    %v66 = vpack.c.b16 %v59, %v58
    %v67 = vpack.c.b16 %v61, %v60
    %v68 = vpack.c.b16 %v63, %v62
    %v69 = vpack.c.b16 %v65, %v64
    %v74 = vunpack.c.l.b16 %v16
    %v75 = vunpack.c.h.b16 %v16
    %v76 = vunpack.c.l.b16 %v17
    %v77 = vunpack.c.h.b16 %v17
    %v78 = vunpack.c.l.b16 %v18
    %v79 = vunpack.c.h.b16 %v18
    %v80 = vunpack.c.l.b16 %v19
    %v81 = vunpack.c.h.b16 %v19
    %v82 = vpack.c.b16 %v78, %v74
    %v83 = vpack.c.b16 %v79, %v75
    %v84 = vpack.c.b16 %v80, %v76
    %v85 = vpack.c.b16 %v81, %v77
    %vm90 = vcmask 130048
    %v92 = vsel %vm90, %v66, 0
    %v95 = vsel %vm90, %v67, 0
    %v98 = vsel %vm90, %v68, 0
    %v101 = vsel %vm90, %v69, 0
    %103 = vmatprep.subr.bf16.mxu0 %v83
    %104 = vmatpush1.bf16.msra.mxu0 %v82
    %105 = vmatprep.subr.bf16.mxu0 0
    %106 = vmatpush1.bf16.msra.mxu0 0
    %107 = vmatprep.subr.bf16.mxu0 0
    %108 = vmatpush1.bf16.msra.mxu0 0
    %109 = vmatprep.subr.bf16.mxu0 0
    %110 = vmatpush1.bf16.msra.mxu0 0
    %111 = vmatprep.subr.bf16.mxu0 0
    %112 = vmatpush1.bf16.msra.mxu0 0
    %113 = vmatprep.subr.bf16.mxu0 0
    %114 = vmatpush1.bf16.msra.mxu0 0
    %115 = vmatprep.subr.bf16.mxu0 0
    %116 = vmatpush1.bf16.msra.mxu0 0
    %117 = vmatprep.subr.bf16.mxu0 0
    %118 = vmatpush1.bf16.msra.mxu0 0
    %119 = vmatprep.subr.bf16.mxu0 0
    %120 = vmatpush1.bf16.msra.mxu0 0
    %121 = vmatprep.subr.bf16.mxu0 0
    %122 = vmatpush1.bf16.msra.mxu0 0
    %123 = vmatprep.subr.bf16.mxu0 0
    %124 = vmatpush1.bf16.msra.mxu0 0
    %125 = vmatprep.subr.bf16.mxu0 0
    %126 = vmatpush1.bf16.msra.mxu0 0
    %127 = vmatprep.subr.bf16.mxu0 0
    %128 = vmatpush1.bf16.msra.mxu0 0
    %129 = vmatprep.subr.bf16.mxu0 0
    %130 = vmatpush1.bf16.msra.mxu0 0
    %131 = vmatprep.subr.bf16.mxu0 0
    %132 = vmatpush1.bf16.msra.mxu0 0
    %133 = vmatprep.subr.bf16.mxu0 0
    %134 = vmatpush1.bf16.msra.mxu0 0
    %135 = vmatprep.mubr.bf16.mxu0 0
    %136 = vmatmul.mubr.bf16.gmra.mrb[0].mxu0 %v92
    %v137 = vpop.f32.mrb[0].mxu0
    %v138 = vadd.f32 %v33, %v137
    %v139 = vpop.f32.mrb[0].mxu0
    %v140 = vadd.f32 %v37, %v139
    %v141 = vpop.f32.mrb[0].mxu0
    %v142 = vadd.f32 %v33, %v141
    %v143 = vpop.f32.mrb[0].mxu0
    %v144 = vadd.f32 %v37, %v143
    %145 = vmatprep.mubr.bf16.mxu0 0
    %146 = vmatmul.mubr.bf16.gmra.mrb[0].mxu0 %v95
    %v147 = vpop.f32.mrb[0].mxu0
    %v148 = vadd.f32 %v33, %v147
    %v149 = vpop.f32.mrb[0].mxu0
    %v150 = vadd.f32 %v37, %v149
    %v151 = vpop.f32.mrb[0].mxu0
    %v152 = vadd.f32 %v33, %v151
    %v153 = vpop.f32.mrb[0].mxu0
    %v154 = vadd.f32 %v37, %v153
    %155 = vmatprep.mubr.bf16.mxu0 0
    %156 = vmatmul.mubr.bf16.gmra.mrb[0].mxu0 %v98
    %v157 = vpop.f32.mrb[0].mxu0
    %v158 = vadd.f32 %v33, %v157
    %v159 = vpop.f32.mrb[0].mxu0
    %v160 = vadd.f32 %v37, %v159
    %v161 = vpop.f32.mrb[0].mxu0
    %v162 = vadd.f32 %v33, %v161
    %v163 = vpop.f32.mrb[0].mxu0
    %v164 = vadd.f32 %v37, %v163
    %165 = vmatprep.mubr.bf16.mxu0 0
    %166 = vmatmul.mubr.bf16.gmra.mrb[0].mxu0 %v101
    %v167 = vpop.f32.mrb[0].mxu0
    %v168 = vadd.f32 %v33, %v167
    %v169 = vpop.f32.mrb[0].mxu0
    %v170 = vadd.f32 %v37, %v169
    %v171 = vpop.f32.mrb[0].mxu0
    %v172 = vadd.f32 %v33, %v171
    %v173 = vpop.f32.mrb[0].mxu0
    %v174 = vadd.f32 %v37, %v173
    %175 = vdwg.mxu0
    %176 = vmatprep.subr.bf16.mxu0 %v85
    %177 = vmatpush1.bf16.msra.mxu0 %v84
    %178 = vmatprep.subr.bf16.mxu0 0
    %179 = vmatpush1.bf16.msra.mxu0 0
    %180 = vmatprep.subr.bf16.mxu0 0
    %181 = vmatpush1.bf16.msra.mxu0 0
    %182 = vmatprep.subr.bf16.mxu0 0
    %183 = vmatpush1.bf16.msra.mxu0 0
    %184 = vmatprep.subr.bf16.mxu0 0
    %185 = vmatpush1.bf16.msra.mxu0 0
    %186 = vmatprep.subr.bf16.mxu0 0
    %187 = vmatpush1.bf16.msra.mxu0 0
    %188 = vmatprep.subr.bf16.mxu0 0
    %189 = vmatpush1.bf16.msra.mxu0 0
    %190 = vmatprep.subr.bf16.mxu0 0
    %191 = vmatpush1.bf16.msra.mxu0 0
    %192 = vmatprep.subr.bf16.mxu0 0
    %193 = vmatpush1.bf16.msra.mxu0 0
    %194 = vmatprep.subr.bf16.mxu0 0
    %195 = vmatpush1.bf16.msra.mxu0 0
    %196 = vmatprep.subr.bf16.mxu0 0
    %197 = vmatpush1.bf16.msra.mxu0 0
    %198 = vmatprep.subr.bf16.mxu0 0
    %199 = vmatpush1.bf16.msra.mxu0 0
    %200 = vmatprep.subr.bf16.mxu0 0
    %201 = vmatpush1.bf16.msra.mxu0 0
    %202 = vmatprep.subr.bf16.mxu0 0
    %203 = vmatpush1.bf16.msra.mxu0 0
    %204 = vmatprep.subr.bf16.mxu0 0
    %205 = vmatpush1.bf16.msra.mxu0 0
    %206 = vmatprep.subr.bf16.mxu0 0
    %207 = vmatpush1.bf16.msra.mxu0 0
    %208 = vmatprep.mubr.bf16.mxu0 0
    %209 = vmatmul.mubr.bf16.gmra.mrb[0].mxu0 %v92
    %v210 = vpop.f32.mrb[0].mxu0
    %v211 = vadd.f32 %v41, %v210
    %v212 = vpop.f32.mrb[0].mxu0
    %v213 = vadd.f32 %v45, %v212
    %v214 = vpop.f32.mrb[0].mxu0
    %v215 = vadd.f32 %v41, %v214
    %v216 = vpop.f32.mrb[0].mxu0
    %v217 = vadd.f32 %v45, %v216
    %218 = vmatprep.mubr.bf16.mxu0 0
    %219 = vmatmul.mubr.bf16.gmra.mrb[0].mxu0 %v95
    %v220 = vpop.f32.mrb[0].mxu0
    %v221 = vadd.f32 %v41, %v220
    %v222 = vpop.f32.mrb[0].mxu0
    %v223 = vadd.f32 %v45, %v222
    %v224 = vpop.f32.mrb[0].mxu0
    %v225 = vadd.f32 %v41, %v224
    %v226 = vpop.f32.mrb[0].mxu0
    %v227 = vadd.f32 %v45, %v226
    %228 = vmatprep.mubr.bf16.mxu0 0
    %229 = vmatmul.mubr.bf16.gmra.mrb[0].mxu0 %v98
    %v230 = vpop.f32.mrb[0].mxu0
    %v231 = vadd.f32 %v41, %v230
    %v232 = vpop.f32.mrb[0].mxu0
    %v233 = vadd.f32 %v45, %v232
    %v234 = vpop.f32.mrb[0].mxu0
    %v235 = vadd.f32 %v41, %v234
    %v236 = vpop.f32.mrb[0].mxu0
    %v237 = vadd.f32 %v45, %v236
    %238 = vmatprep.mubr.bf16.mxu0 0
    %239 = vmatmul.mubr.bf16.gmra.mrb[0].mxu0 %v101
    %v240 = vpop.f32.mrb[0].mxu0
    %v241 = vadd.f32 %v41, %v240
    %v242 = vpop.f32.mrb[0].mxu0
    %v243 = vadd.f32 %v45, %v242
    %v244 = vpop.f32.mrb[0].mxu0
    %v245 = vadd.f32 %v41, %v244
    %v246 = vpop.f32.mrb[0].mxu0
    %v247 = vadd.f32 %v45, %v246
    %248 = vdwg.mxu0
    %v249 = vpack.c.bf16 %v142, %v138
    %v250 = vpack.c.bf16 %v144, %v140
    %v251 = vpack.c.bf16 %v215, %v211
    %v252 = vpack.c.bf16 %v217, %v213
    %v253 = vpack.c.bf16 %v152, %v148
    %v254 = vpack.c.bf16 %v154, %v150
    %v255 = vpack.c.bf16 %v225, %v221
    %v256 = vpack.c.bf16 %v227, %v223
    %v257 = vpack.c.bf16 %v162, %v158
    %v258 = vpack.c.bf16 %v164, %v160
    %v259 = vpack.c.bf16 %v235, %v231
    %v260 = vpack.c.bf16 %v237, %v233
    %v261 = vpack.c.bf16 %v172, %v168
    %v262 = vpack.c.bf16 %v174, %v170
    %v263 = vpack.c.bf16 %v245, %v241
    %v264 = vpack.c.bf16 %v247, %v243
    %v281 = vunpack.c.l.b16 %v249
    %v282 = vunpack.c.l.b16 %v250
    %v283 = vunpack.c.l.b16 %v251
    %v284 = vunpack.c.l.b16 %v252
    %v285 = vunpack.c.h.b16 %v249
    %v286 = vunpack.c.h.b16 %v250
    %v287 = vunpack.c.h.b16 %v251
    %v288 = vunpack.c.h.b16 %v252
    %v289 = vunpack.c.l.b16 %v253
    %v290 = vunpack.c.l.b16 %v254
    %v291 = vunpack.c.l.b16 %v255
    %v292 = vunpack.c.l.b16 %v256
    %v293 = vunpack.c.h.b16 %v253
    %v294 = vunpack.c.h.b16 %v254
    %v295 = vunpack.c.h.b16 %v255
    %v296 = vunpack.c.h.b16 %v256
    %v297 = vunpack.c.l.b16 %v257
    %v298 = vunpack.c.l.b16 %v258
    %v299 = vunpack.c.l.b16 %v259
    %v300 = vunpack.c.l.b16 %v260
    %v301 = vunpack.c.h.b16 %v257
    %v302 = vunpack.c.h.b16 %v258
    %v303 = vunpack.c.h.b16 %v259
    %v304 = vunpack.c.h.b16 %v260
    %v305 = vunpack.c.l.b16 %v261
    %v306 = vunpack.c.l.b16 %v262
    %v307 = vunpack.c.l.b16 %v263
    %v308 = vunpack.c.l.b16 %v264
    %v309 = vunpack.c.h.b16 %v261
    %v310 = vunpack.c.h.b16 %v262
    %v311 = vunpack.c.h.b16 %v263
    %v312 = vunpack.c.h.b16 %v264
    %v313 = vpack.c.b16 %v282, %v281
    %v314 = vpack.c.b16 %v284, %v283
    %v315 = vpack.c.b16 %v286, %v285
    %v316 = vpack.c.b16 %v288, %v287
    %v317 = vpack.c.b16 %v290, %v289
    %v318 = vpack.c.b16 %v292, %v291
    %v319 = vpack.c.b16 %v294, %v293
    %v320 = vpack.c.b16 %v296, %v295
    %v321 = vpack.c.b16 %v298, %v297
    %v322 = vpack.c.b16 %v300, %v299
    %v323 = vpack.c.b16 %v302, %v301
    %v324 = vpack.c.b16 %v304, %v303
    %v325 = vpack.c.b16 %v306, %v305
    %v326 = vpack.c.b16 %v308, %v307
    %v327 = vpack.c.b16 %v310, %v309
    %v328 = vpack.c.b16 %v312, %v311
    %345 = vst [vmem:[#allocation2] sm:$0xff] %v313
    %346 = vst [vmem:[#allocation2 + $0x8] sm:$0xff] %v314
    %347 = vst [vmem:[#allocation2 + $0x10] sm:$0xff] %v315
    %348 = vst [vmem:[#allocation2 + $0x18] sm:$0xff] %v316
    %349 = vst [vmem:[#allocation2 + $0x20] sm:$0xff] %v317
    %350 = vst [vmem:[#allocation2 + $0x28] sm:$0xff] %v318
    %351 = vst [vmem:[#allocation2 + $0x30] sm:$0xff] %v319
    %352 = vst [vmem:[#allocation2 + $0x38] sm:$0xff] %v320
    %353 = vst [vmem:[#allocation2 + $0x40] sm:$0xff] %v321
    %354 = vst [vmem:[#allocation2 + $0x48] sm:$0xff] %v322
    %355 = vst [vmem:[#allocation2 + $0x50] sm:$0xff] %v323
    %356 = vst [vmem:[#allocation2 + $0x58] sm:$0xff] %v324
    %357 = vst [vmem:[#allocation2 + $0x60] sm:$0xff] %v325
    %358 = vst [vmem:[#allocation2 + $0x68] sm:$0xff] %v326
    %359 = vst [vmem:[#allocation2 + $0x70] sm:$0xff] %v327
    %360 = vst [vmem:[#allocation2 + $0x78] sm:$0xff] %v328
    // Predicated region
    $region14: #{tpu_custom_call.1} parent=1 // pred_check
      _
    $region15: #{tpu_custom_call.1} parent=1 // pred_check_branch
      %362 = sbr.rel (0) target = $region17
    $region16: #{tpu_custom_call.1} parent=1 // pred_region
      %s364 = ssub.s32 2048, 2048
      %365 = vsyncadd [#allocation3], %s364
      %s366 = sshll.u32 [#allocation2], 4
      %s367 = int_to_ptr.vmem [resolvable:$true] %s366
      %372 = dma.vmem_to_hbm [thread:$0]  %s367, 2048, %s3, [#allocation3], 256, 256, 16
    $region17: #{tpu_custom_call.1} parent=1 // pred_fallthru
      _
    // Predicated region
    $region18: #{tpu_custom_call.1} parent=1 // pred_check
      _
    $region19: #{tpu_custom_call.1} parent=1 // pred_check_branch
      %374 = sbr.rel (0) target = $region21
    $region20: #{tpu_custom_call.1} parent=1 // pred_region
      %375 = dma.done [#allocation3], 2048
    $region21: #{tpu_custom_call.1} parent=1 // pred_fallthru
      _
    %376 = vsyncpa [#allocation3], 1

</llo_original>
